<compile_context>
chip_gen: v6e
topology: v6e:2x2x1
jax: 0.10.0
libtpu: 0.0.40
codegen_flags: <defaults>
</compile_context>

<pallas_src>
import jax
import jax.numpy as jnp
from jax.experimental import pallas as pl
from jax.experimental.pallas import tpu as pltpu

_LANES = 128
# Whole-problem byte budget (2 inputs + 1 output held as single un-pipelined
# VMEM buffers) under which the grid-less path is used.  24 MiB fits every
# generation's physical VMEM (v7x: 64 MiB) and stays under the requested
# 32 MiB scoped limit.
_SMALL_TOTAL_BYTES = 24 * 1024 * 1024
# Tiled path: ~2 MiB per operand per block (rows a multiple of 8).
_TILE_BYTES = 2 * 1024 * 1024
_VMEM_LIMIT = 32 * 1024 * 1024


def _add_relu_kernel(a_ref, b_ref, o_ref):
    # Fused elementwise add + relu on the VPU.
    o_ref[...] = jnp.maximum(a_ref[...] + b_ref[...], 0.0)


def _add_relu_whole(a2, b2):
    """Single grid-less whole-array VMEM block (no pipeline, minimal overhead)."""
    return pl.pallas_call(
        _add_relu_kernel,
        out_shape=jax.ShapeDtypeStruct(a2.shape, a2.dtype),
        in_specs=[
            pl.BlockSpec(memory_space=pltpu.MemorySpace.VMEM),
            pl.BlockSpec(memory_space=pltpu.MemorySpace.VMEM),
        ],
        out_specs=pl.BlockSpec(memory_space=pltpu.MemorySpace.VMEM),
        compiler_params=pltpu.CompilerParams(vmem_limit_bytes=_VMEM_LIMIT),
    )(a2, b2)


def _add_relu_tiled(a2, b2, tile_rows):
    """Row-tiled, 'parallel' (megacore-shardable), pipelined path for big inputs.

    grid = cdiv(rows, tile_rows): the last block may be partial and is masked
    by Pallas — no wrapper-side padding or output slicing needed.
    """
    rows, cols = a2.shape
    grid = (pl.cdiv(rows, tile_rows),)
    spec = pl.BlockSpec((tile_rows, cols), lambda i: (i, 0))
    return pl.pallas_call(
        _add_relu_kernel,
        out_shape=jax.ShapeDtypeStruct((rows, cols), a2.dtype),
        grid_spec=pltpu.PrefetchScalarGridSpec(
            num_scalar_prefetch=0,
            grid=grid,
            in_specs=[spec, spec],
            out_specs=spec,
        ),
        compiler_params=pltpu.CompilerParams(
            dimension_semantics=("parallel",),
            vmem_limit_bytes=_VMEM_LIMIT,
        ),
    )(a2, b2)


def add_relu(x313: jax.Array, x327: jax.Array) -> jax.Array:
    assert x313.shape == x327.shape
    assert x313.dtype == x327.dtype
    orig_shape = x313.shape
    total = x313.size
    itemsize = x313.dtype.itemsize

    # Zero-copy 2-D view (reshape of a contiguous row-major array is a
    # bitcast): lane-dense (rows, 128) when possible, otherwise keep the
    # natural trailing dim on the lane axis.
    if total % _LANES == 0:
        rows, cols = total // _LANES, _LANES
    else:
        cols = orig_shape[-1] if len(orig_shape) >= 1 else total
        rows = total // cols
    a2 = x313.reshape(rows, cols)
    b2 = x327.reshape(rows, cols)

    if 3 * total * itemsize <= _SMALL_TOTAL_BYTES:
        out2 = _add_relu_whole(a2, b2)
    else:
        # ~2 MiB blocks, tile_rows a multiple of 8 (the (8,128) rule applies
        # to the BlockSpec, the array itself may have a ragged last block).
        tile_rows = max(8, (_TILE_BYTES // (cols * itemsize)) // 8 * 8)
        if rows >= 8:
            tile_rows = min(tile_rows, (rows // 8) * 8)
        out2 = _add_relu_tiled(a2, b2, tile_rows)

    return out2.reshape(orig_shape)


if __name__ == "__main__":
    key = jax.random.PRNGKey(0)
    k1, k2, k3, k4, k5, k6 = jax.random.split(key, 6)

    # 1) The module's exact shape: small / grid-less whole-array path.
    shape = (1, 576, 14, 14)
    x313 = jax.random.normal(k1, shape, dtype=jnp.float32)
    x327 = jax.random.normal(k2, shape, dtype=jnp.float32)
    out = add_relu(x313, x327)
    jax.block_until_ready(out)
    ref = jnp.maximum(x313 + x327, 0.0)
    assert out.shape == shape
    assert jnp.allclose(out, ref), "mismatch vs reference (small path)"

    # 2) Large shape: exercises the tiled 'parallel' path with a masked
    #    partial last block (rows=18432, tile=4096 -> grid of 5), no padding.
    shape_big = (4, 576, 32, 32)
    y1 = jax.random.normal(k3, shape_big, dtype=jnp.float32)
    y2 = jax.random.normal(k4, shape_big, dtype=jnp.float32)
    out_big = add_relu(y1, y2)
    jax.block_until_ready(out_big)
    assert jnp.allclose(out_big, jnp.maximum(y1 + y2, 0.0)), "mismatch (tiled)"

    # 3) Element count not divisible by 128: fallback 2-D view, whole-array path.
    shape_odd = (2, 3, 5, 7)
    z1 = jax.random.normal(k5, shape_odd, dtype=jnp.float32)
    z2 = jax.random.normal(k6, shape_odd, dtype=jnp.float32)
    out_odd = add_relu(z1, z2)
    jax.block_until_ready(out_odd)
    assert jnp.allclose(out_odd, jnp.maximum(z1 + z2, 0.0)), "mismatch (odd)"

    print("KERNEL_OK")
</pallas_src>

<mosaic_0001>
module attributes {stable_mosaic.version = 11 : i64} {
  func.func @_add_relu_kernel(%arg0: memref<882x128xf32, #tpu.memory_space<vmem>>, %arg1: memref<882x128xf32, #tpu.memory_space<vmem>>, %arg2: memref<882x128xf32, #tpu.memory_space<vmem>>) attributes {dimension_semantics = [], scalar_prefetch = 0 : i64, scratch_operands = 0 : i64, tpu.core_type = #tpu.core_type<tc>} {
    %c0 = arith.constant 0 : index
    %c0_0 = arith.constant 0 : index
    %0 = vector.load %arg0[%c0, %c0_0] : memref<882x128xf32, #tpu.memory_space<vmem>>, vector<882x128xf32>
    %c0_1 = arith.constant 0 : index
    %c0_2 = arith.constant 0 : index
    %1 = vector.load %arg1[%c0_1, %c0_2] : memref<882x128xf32, #tpu.memory_space<vmem>>, vector<882x128xf32>
    %2 = arith.addf %0, %1 : vector<882x128xf32>
    %cst = arith.constant 0.000000e+00 : f32
    %3 = vector.broadcast %cst : f32 to vector<882x128xf32>
    %4 = arith.maximumf %2, %3 : vector<882x128xf32>
    %c0_3 = arith.constant 0 : index
    %c0_4 = arith.constant 0 : index
    %5 = vector.load %arg2[%c0_3, %c0_4] : memref<882x128xf32, #tpu.memory_space<vmem>>, vector<882x128xf32>
    tpu.vector_store %arg2[%c0_3, %c0_4], %4 {strides = array<i32>} : memref<882x128xf32, #tpu.memory_space<vmem>>, vector<882x128xf32>,
    return
  }
}

</mosaic_0001>

<llo_original>
// kernel: tpu_custom_call.1
$region0: #{tpu_custom_call.1}
  #allocation0 [shape = 'u32[]', space=smem, size = 0x4, offset = 0x4, fixed_abs, tag = 'smem constant byte address 0x4 - core index']
  #allocation1 [shape = 'u32[144,128]{1,0:T(1,128)}', space=vmem, size = 0x12000, scoped, tag = 'internal scratch']
  %s0 = inlined_call_operand.hbm [shape: f32[882,128], index: 0, kind: input, shape index: {}]
  %s1 = inlined_call_operand.hbm [shape: f32[882,128], index: 1, kind: input, shape index: {}]
  %s2 = inlined_call_operand.hbm [shape: f32[882,128], index: 2, kind: output, shape index: {}]
  %s3 = sld [smem:[#allocation0]]
  $region26: #{tpu_custom_call.1} parent=0
    _
  %s5 = ssub.s32 1, %s3
  %s6 = scalar_select 0, %s5, %s3
  $region1: #{tpu_custom_call.1} parent=0
    #allocation2 [shape = 'u8[454656]{0}', space=vmem, size = 0x6f000, scoped, tag = 'input window, operand 0, single buffered']
    #allocation3 [shape = 's32[1]{0}', space=sflag, size = 0x4, scoped, tag = 'scoped memory for tpu_custom_call.1']
    #allocation4 [shape = 's32[1]{0}', space=sflag, size = 0x4, scoped, tag = 'scoped memory for tpu_custom_call.1']
    #allocation5 [shape = 'u8[454656]{0}', space=vmem, size = 0x6f000, scoped, tag = 'input window, operand 1, single buffered']
    #allocation6 [shape = 's32[1]{0}', space=sflag, size = 0x4, scoped, tag = 'scoped memory for tpu_custom_call.1']
    #allocation7 [shape = 'u8[454656]{0}', space=vmem, size = 0x6f000, scoped, tag = 'output window, operand 0, single buffered']
    %7 = vsyncpa [#allocation3], 0
    %8 = vsyncpa [#allocation6], 0
    %9 = vsyncpa [#allocation4], 0
    // Predicated region
    $region2: #{tpu_custom_call.1} parent=1 // pred_check
      _
    $region3: #{tpu_custom_call.1} parent=1 // pred_check_branch
      %11 = sbr.rel (0) target = $region5
    $region4: #{tpu_custom_call.1} parent=1 // pred_region
      %s13 = ssub.s32 14208, 14208
      %14 = vsyncadd [#allocation3], %s13
      %s15 = sshll.u32 [#allocation2], 4
      %s16 = int_to_ptr.vmem [resolvable:$true] %s15
      %21 = dma.hbm_to_vmem [thread:$0]  %s0, 14208, %s16, [#allocation3], 128, 128, 8
    $region5: #{tpu_custom_call.1} parent=1 // pred_fallthru
      _
    // Predicated region
    $region6: #{tpu_custom_call.1} parent=1 // pred_check
      _
    $region7: #{tpu_custom_call.1} parent=1 // pred_check_branch
      %23 = sbr.rel (0) target = $region9
    $region8: #{tpu_custom_call.1} parent=1 // pred_region
      %s25 = ssub.s32 14208, 14208
      %26 = vsyncadd [#allocation6], %s25
      %s27 = sshll.u32 [#allocation5], 4
      %s28 = int_to_ptr.vmem [resolvable:$true] %s27
      %33 = dma.hbm_to_vmem [thread:$0]  %s1, 14208, %s28, [#allocation6], 128, 128, 8
    $region9: #{tpu_custom_call.1} parent=1 // pred_fallthru
      _
    // Predicated region
    $region10: #{tpu_custom_call.1} parent=1 // pred_check
      _
    $region11: #{tpu_custom_call.1} parent=1 // pred_check_branch
      %35 = sbr.rel (0) target = $region13
    $region12: #{tpu_custom_call.1} parent=1 // pred_region
      %36 = dma.done [#allocation3], 14208
    $region13: #{tpu_custom_call.1} parent=1 // pred_fallthru
      _
    // Predicated region
    $region14: #{tpu_custom_call.1} parent=1 // pred_check
      _
    $region15: #{tpu_custom_call.1} parent=1 // pred_check_branch
      %38 = sbr.rel (0) target = $region17
    $region16: #{tpu_custom_call.1} parent=1 // pred_region
      %39 = dma.done [#allocation6], 14208
    $region17: #{tpu_custom_call.1} parent=1 // pred_fallthru
      _
    %v40 = vld [vmem:[#allocation2] sm:$0xff]
    %v41 = vld [vmem:[#allocation2 + $0x8] sm:$0xff]
    %v42 = vld [vmem:[#allocation2 + $0x10] sm:$0xff]
    %v43 = vld [vmem:[#allocation2 + $0x18] sm:$0xff]
    %v44 = vld [vmem:[#allocation2 + $0x20] sm:$0xff]
    %v45 = vld [vmem:[#allocation2 + $0x28] sm:$0xff]
    %v46 = vld [vmem:[#allocation2 + $0x30] sm:$0xff]
    %v47 = vld [vmem:[#allocation2 + $0x38] sm:$0xff]
    %v48 = vld [vmem:[#allocation2 + $0x40] sm:$0xff]
    %v49 = vld [vmem:[#allocation2 + $0x48] sm:$0xff]
    %v50 = vld [vmem:[#allocation2 + $0x50] sm:$0xff]
    %v51 = vld [vmem:[#allocation2 + $0x58] sm:$0xff]
    %v52 = vld [vmem:[#allocation2 + $0x60] sm:$0xff]
    %v53 = vld [vmem:[#allocation2 + $0x68] sm:$0xff]
    %v54 = vld [vmem:[#allocation2 + $0x70] sm:$0xff]
    %v55 = vld [vmem:[#allocation2 + $0x78] sm:$0xff]
    %v56 = vld [vmem:[#allocation2 + $0x80] sm:$0xff]
    %v57 = vld [vmem:[#allocation2 + $0x88] sm:$0xff]
    %v58 = vld [vmem:[#allocation2 + $0x90] sm:$0xff]
    %v59 = vld [vmem:[#allocation2 + $0x98] sm:$0xff]
    %v60 = vld [vmem:[#allocation2 + $0xa0] sm:$0xff]
    %v61 = vld [vmem:[#allocation2 + $0xa8] sm:$0xff]
    %v62 = vld [vmem:[#allocation2 + $0xb0] sm:$0xff]
    %v63 = vld [vmem:[#allocation2 + $0xb8] sm:$0xff]
    %v64 = vld [vmem:[#allocation2 + $0xc0] sm:$0xff]
    %v65 = vld [vmem:[#allocation2 + $0xc8] sm:$0xff]
    %v66 = vld [vmem:[#allocation2 + $0xd0] sm:$0xff]
    %v67 = vld [vmem:[#allocation2 + $0xd8] sm:$0xff]
    %v68 = vld [vmem:[#allocation2 + $0xe0] sm:$0xff]
    %v69 = vld [vmem:[#allocation2 + $0xe8] sm:$0xff]
    %v70 = vld [vmem:[#allocation2 + $0xf0] sm:$0xff]
    %v71 = vld [vmem:[#allocation2 + $0xf8] sm:$0xff]
    %v72 = vld [vmem:[#allocation2 + $0x100] sm:$0xff]
    %v73 = vld [vmem:[#allocation2 + $0x108] sm:$0xff]
    %v74 = vld [vmem:[#allocation2 + $0x110] sm:$0xff]
    %v75 = vld [vmem:[#allocation2 + $0x118] sm:$0xff]
    %v76 = vld [vmem:[#allocation2 + $0x120] sm:$0xff]
    %v77 = vld [vmem:[#allocation2 + $0x128] sm:$0xff]
    %v78 = vld [vmem:[#allocation2 + $0x130] sm:$0xff]
    %v79 = vld [vmem:[#allocation2 + $0x138] sm:$0xff]
    %v80 = vld [vmem:[#allocation2 + $0x140] sm:$0xff]
    %v81 = vld [vmem:[#allocation2 + $0x148] sm:$0xff]
    %v82 = vld [vmem:[#allocation2 + $0x150] sm:$0xff]
    %v83 = vld [vmem:[#allocation2 + $0x158] sm:$0xff]
    %v84 = vld [vmem:[#allocation2 + $0x160] sm:$0xff]
    %v85 = vld [vmem:[#allocation2 + $0x168] sm:$0xff]
    %v86 = vld [vmem:[#allocation2 + $0x170] sm:$0xff]
    %v87 = vld [vmem:[#allocation2 + $0x178] sm:$0xff]
    %v88 = vld [vmem:[#allocation2 + $0x180] sm:$0xff]
    %v89 = vld [vmem:[#allocation2 + $0x188] sm:$0xff]
    %v90 = vld [vmem:[#allocation2 + $0x190] sm:$0xff]
    %v91 = vld [vmem:[#allocation2 + $0x198] sm:$0xff]
    %v92 = vld [vmem:[#allocation2 + $0x1a0] sm:$0xff]
    %v93 = vld [vmem:[#allocation2 + $0x1a8] sm:$0xff]
    %v94 = vld [vmem:[#allocation2 + $0x1b0] sm:$0xff]
    %v95 = vld [vmem:[#allocation2 + $0x1b8] sm:$0xff]
    %v96 = vld [vmem:[#allocation2 + $0x1c0] sm:$0xff]
    %v97 = vld [vmem:[#allocation2 + $0x1c8] sm:$0xff]
    %v98 = vld [vmem:[#allocation2 + $0x1d0] sm:$0xff]
    %v99 = vld [vmem:[#allocation2 + $0x1d8] sm:$0xff]
    %v100 = vld [vmem:[#allocation2 + $0x1e0] sm:$0xff]
    %v101 = vld [vmem:[#allocation2 + $0x1e8] sm:$0xff]
    %v102 = vld [vmem:[#allocation2 + $0x1f0] sm:$0xff]
    %v103 = vld [vmem:[#allocation2 + $0x1f8] sm:$0xff]
    %v104 = vld [vmem:[#allocation2 + $0x200] sm:$0xff]
    %v105 = vld [vmem:[#allocation2 + $0x208] sm:$0xff]
    %v106 = vld [vmem:[#allocation2 + $0x210] sm:$0xff]
    %v107 = vld [vmem:[#allocation2 + $0x218] sm:$0xff]
    %v108 = vld [vmem:[#allocation2 + $0x220] sm:$0xff]
    %v109 = vld [vmem:[#allocation2 + $0x228] sm:$0xff]
    %v110 = vld [vmem:[#allocation2 + $0x230] sm:$0xff]
    %v111 = vld [vmem:[#allocation2 + $0x238] sm:$0xff]
    %v112 = vld [vmem:[#allocation2 + $0x240] sm:$0xff]
    %v113 = vld [vmem:[#allocation2 + $0x248] sm:$0xff]
    %v114 = vld [vmem:[#allocation2 + $0x250] sm:$0xff]
    %v115 = vld [vmem:[#allocation2 + $0x258] sm:$0xff]
    %v116 = vld [vmem:[#allocation2 + $0x260] sm:$0xff]
    %v117 = vld [vmem:[#allocation2 + $0x268] sm:$0xff]
    %v118 = vld [vmem:[#allocation2 + $0x270] sm:$0xff]
    %v119 = vld [vmem:[#allocation2 + $0x278] sm:$0xff]
    %v120 = vld [vmem:[#allocation2 + $0x280] sm:$0xff]
    %v121 = vld [vmem:[#allocation2 + $0x288] sm:$0xff]
    %v122 = vld [vmem:[#allocation2 + $0x290] sm:$0xff]
    %v123 = vld [vmem:[#allocation2 + $0x298] sm:$0xff]
    %v124 = vld [vmem:[#allocation2 + $0x2a0] sm:$0xff]
    %v125 = vld [vmem:[#allocation2 + $0x2a8] sm:$0xff]
    %v126 = vld [vmem:[#allocation2 + $0x2b0] sm:$0xff]
    %v127 = vld [vmem:[#allocation2 + $0x2b8] sm:$0xff]
    %v128 = vld [vmem:[#allocation2 + $0x2c0] sm:$0xff]
    %v129 = vld [vmem:[#allocation2 + $0x2c8] sm:$0xff]
    %v130 = vld [vmem:[#allocation2 + $0x2d0] sm:$0xff]
    %v131 = vld [vmem:[#allocation2 + $0x2d8] sm:$0xff]
    %v132 = vld [vmem:[#allocation2 + $0x2e0] sm:$0xff]
    %v133 = vld [vmem:[#allocation2 + $0x2e8] sm:$0xff]
    %v134 = vld [vmem:[#allocation2 + $0x2f0] sm:$0xff]
    %v135 = vld [vmem:[#allocation2 + $0x2f8] sm:$0xff]
    %v136 = vld [vmem:[#allocation2 + $0x300] sm:$0xff]
    %v137 = vld [vmem:[#allocation2 + $0x308] sm:$0xff]
    %v138 = vld [vmem:[#allocation2 + $0x310] sm:$0xff]
    %v139 = vld [vmem:[#allocation2 + $0x318] sm:$0xff]
    %v140 = vld [vmem:[#allocation2 + $0x320] sm:$0xff]
    %v141 = vld [vmem:[#allocation2 + $0x328] sm:$0xff]
    %v142 = vld [vmem:[#allocation2 + $0x330] sm:$0xff]
    %v143 = vld [vmem:[#allocation2 + $0x338] sm:$0xff]
    %v144 = vld [vmem:[#allocation2 + $0x340] sm:$0xff]
    %v145 = vld [vmem:[#allocation2 + $0x348] sm:$0xff]
    %v146 = vld [vmem:[#allocation2 + $0x350] sm:$0xff]
    %v147 = vld [vmem:[#allocation2 + $0x358] sm:$0xff]
    %v148 = vld [vmem:[#allocation2 + $0x360] sm:$0xff]
    %v149 = vld [vmem:[#allocation2 + $0x368] sm:$0xff]
    %v150 = vld [vmem:[#allocation2 + $0x370] sm:$0x3]
    %v151 = vld [vmem:[#allocation5] sm:$0xff]
    %v152 = vld [vmem:[#allocation5 + $0x8] sm:$0xff]
    %v153 = vld [vmem:[#allocation5 + $0x10] sm:$0xff]
    %v154 = vld [vmem:[#allocation5 + $0x18] sm:$0xff]
    %v155 = vld [vmem:[#allocation5 + $0x20] sm:$0xff]
    %v156 = vld [vmem:[#allocation5 + $0x28] sm:$0xff]
    %v157 = vld [vmem:[#allocation5 + $0x30] sm:$0xff]
    %v158 = vld [vmem:[#allocation5 + $0x38] sm:$0xff]
    %v159 = vld [vmem:[#allocation5 + $0x40] sm:$0xff]
    %v160 = vld [vmem:[#allocation5 + $0x48] sm:$0xff]
    %v161 = vld [vmem:[#allocation5 + $0x50] sm:$0xff]
    %v162 = vld [vmem:[#allocation5 + $0x58] sm:$0xff]
    %v163 = vld [vmem:[#allocation5 + $0x60] sm:$0xff]
    %v164 = vld [vmem:[#allocation5 + $0x68] sm:$0xff]
    %v165 = vld [vmem:[#allocation5 + $0x70] sm:$0xff]
    %v166 = vld [vmem:[#allocation5 + $0x78] sm:$0xff]
    %v167 = vld [vmem:[#allocation5 + $0x80] sm:$0xff]
    %v168 = vld [vmem:[#allocation5 + $0x88] sm:$0xff]
    %v169 = vld [vmem:[#allocation5 + $0x90] sm:$0xff]
    %v170 = vld [vmem:[#allocation5 + $0x98] sm:$0xff]
    %v171 = vld [vmem:[#allocation5 + $0xa0] sm:$0xff]
    %v172 = vld [vmem:[#allocation5 + $0xa8] sm:$0xff]
    %v173 = vld [vmem:[#allocation5 + $0xb0] sm:$0xff]
    %v174 = vld [vmem:[#allocation5 + $0xb8] sm:$0xff]
    %v175 = vld [vmem:[#allocation5 + $0xc0] sm:$0xff]
    %v176 = vld [vmem:[#allocation5 + $0xc8] sm:$0xff]
    %v177 = vld [vmem:[#allocation5 + $0xd0] sm:$0xff]
    %v178 = vld [vmem:[#allocation5 + $0xd8] sm:$0xff]
    %v179 = vld [vmem:[#allocation5 + $0xe0] sm:$0xff]
    %v180 = vld [vmem:[#allocation5 + $0xe8] sm:$0xff]
    %v181 = vld [vmem:[#allocation5 + $0xf0] sm:$0xff]
    %v182 = vld [vmem:[#allocation5 + $0xf8] sm:$0xff]
    %v183 = vld [vmem:[#allocation5 + $0x100] sm:$0xff]
    %v184 = vld [vmem:[#allocation5 + $0x108] sm:$0xff]
    %v185 = vld [vmem:[#allocation5 + $0x110] sm:$0xff]
    %v186 = vld [vmem:[#allocation5 + $0x118] sm:$0xff]
    %v187 = vld [vmem:[#allocation5 + $0x120] sm:$0xff]
    %v188 = vld [vmem:[#allocation5 + $0x128] sm:$0xff]
    %v189 = vld [vmem:[#allocation5 + $0x130] sm:$0xff]
    %v190 = vld [vmem:[#allocation5 + $0x138] sm:$0xff]
    %v191 = vld [vmem:[#allocation5 + $0x140] sm:$0xff]
    %v192 = vld [vmem:[#allocation5 + $0x148] sm:$0xff]
    %v193 = vld [vmem:[#allocation5 + $0x150] sm:$0xff]
    %v194 = vld [vmem:[#allocation5 + $0x158] sm:$0xff]
    %v195 = vld [vmem:[#allocation5 + $0x160] sm:$0xff]
    %v196 = vld [vmem:[#allocation5 + $0x168] sm:$0xff]
    %v197 = vld [vmem:[#allocation5 + $0x170] sm:$0xff]
    %v198 = vld [vmem:[#allocation5 + $0x178] sm:$0xff]
    %v199 = vld [vmem:[#allocation5 + $0x180] sm:$0xff]
    %v200 = vld [vmem:[#allocation5 + $0x188] sm:$0xff]
    %v201 = vld [vmem:[#allocation5 + $0x190] sm:$0xff]
    %v202 = vld [vmem:[#allocation5 + $0x198] sm:$0xff]
    %v203 = vld [vmem:[#allocation5 + $0x1a0] sm:$0xff]
    %v204 = vld [vmem:[#allocation5 + $0x1a8] sm:$0xff]
    %v205 = vld [vmem:[#allocation5 + $0x1b0] sm:$0xff]
    %v206 = vld [vmem:[#allocation5 + $0x1b8] sm:$0xff]
    %v207 = vld [vmem:[#allocation5 + $0x1c0] sm:$0xff]
    %v208 = vld [vmem:[#allocation5 + $0x1c8] sm:$0xff]
    %v209 = vld [vmem:[#allocation5 + $0x1d0] sm:$0xff]
    %v210 = vld [vmem:[#allocation5 + $0x1d8] sm:$0xff]
    %v211 = vld [vmem:[#allocation5 + $0x1e0] sm:$0xff]
    %v212 = vld [vmem:[#allocation5 + $0x1e8] sm:$0xff]
    %v213 = vld [vmem:[#allocation5 + $0x1f0] sm:$0xff]
    %v214 = vld [vmem:[#allocation5 + $0x1f8] sm:$0xff]
    %v215 = vld [vmem:[#allocation5 + $0x200] sm:$0xff]
    %v216 = vld [vmem:[#allocation5 + $0x208] sm:$0xff]
    %v217 = vld [vmem:[#allocation5 + $0x210] sm:$0xff]
    %v218 = vld [vmem:[#allocation5 + $0x218] sm:$0xff]
    %v219 = vld [vmem:[#allocation5 + $0x220] sm:$0xff]
    %v220 = vld [vmem:[#allocation5 + $0x228] sm:$0xff]
    %v221 = vld [vmem:[#allocation5 + $0x230] sm:$0xff]
    %v222 = vld [vmem:[#allocation5 + $0x238] sm:$0xff]
    %v223 = vld [vmem:[#allocation5 + $0x240] sm:$0xff]
    %v224 = vld [vmem:[#allocation5 + $0x248] sm:$0xff]
    %v225 = vld [vmem:[#allocation5 + $0x250] sm:$0xff]
    %v226 = vld [vmem:[#allocation5 + $0x258] sm:$0xff]
    %v227 = vld [vmem:[#allocation5 + $0x260] sm:$0xff]
    %v228 = vld [vmem:[#allocation5 + $0x268] sm:$0xff]
    %v229 = vld [vmem:[#allocation5 + $0x270] sm:$0xff]
    %v230 = vld [vmem:[#allocation5 + $0x278] sm:$0xff]
    %v231 = vld [vmem:[#allocation5 + $0x280] sm:$0xff]
    %v232 = vld [vmem:[#allocation5 + $0x288] sm:$0xff]
    %v233 = vld [vmem:[#allocation5 + $0x290] sm:$0xff]
    %v234 = vld [vmem:[#allocation5 + $0x298] sm:$0xff]
    %v235 = vld [vmem:[#allocation5 + $0x2a0] sm:$0xff]
    %v236 = vld [vmem:[#allocation5 + $0x2a8] sm:$0xff]
    %v237 = vld [vmem:[#allocation5 + $0x2b0] sm:$0xff]
    %v238 = vld [vmem:[#allocation5 + $0x2b8] sm:$0xff]
    %v239 = vld [vmem:[#allocation5 + $0x2c0] sm:$0xff]
    %v240 = vld [vmem:[#allocation5 + $0x2c8] sm:$0xff]
    %v241 = vld [vmem:[#allocation5 + $0x2d0] sm:$0xff]
    %v242 = vld [vmem:[#allocation5 + $0x2d8] sm:$0xff]
    %v243 = vld [vmem:[#allocation5 + $0x2e0] sm:$0xff]
    %v244 = vld [vmem:[#allocation5 + $0x2e8] sm:$0xff]
    %v245 = vld [vmem:[#allocation5 + $0x2f0] sm:$0xff]
    %v246 = vld [vmem:[#allocation5 + $0x2f8] sm:$0xff]
    %v247 = vld [vmem:[#allocation5 + $0x300] sm:$0xff]
    %v248 = vld [vmem:[#allocation5 + $0x308] sm:$0xff]
    %v249 = vld [vmem:[#allocation5 + $0x310] sm:$0xff]
    %v250 = vld [vmem:[#allocation5 + $0x318] sm:$0xff]
    %v251 = vld [vmem:[#allocation5 + $0x320] sm:$0xff]
    %v252 = vld [vmem:[#allocation5 + $0x328] sm:$0xff]
    %v253 = vld [vmem:[#allocation5 + $0x330] sm:$0xff]
    %v254 = vld [vmem:[#allocation5 + $0x338] sm:$0xff]
    %v255 = vld [vmem:[#allocation5 + $0x340] sm:$0xff]
    %v256 = vld [vmem:[#allocation5 + $0x348] sm:$0xff]
    %v257 = vld [vmem:[#allocation5 + $0x350] sm:$0xff]
    %v258 = vld [vmem:[#allocation5 + $0x358] sm:$0xff]
    %v259 = vld [vmem:[#allocation5 + $0x360] sm:$0xff]
    %v260 = vld [vmem:[#allocation5 + $0x368] sm:$0xff]
    %v261 = vld [vmem:[#allocation5 + $0x370] sm:$0x3]
    %v262 = vadd.f32 %v40, %v151
    %v263 = vadd.f32 %v41, %v152
    %v264 = vadd.f32 %v42, %v153
    %v265 = vadd.f32 %v43, %v154
    %v266 = vadd.f32 %v44, %v155
    %v267 = vadd.f32 %v45, %v156
    %v268 = vadd.f32 %v46, %v157
    %v269 = vadd.f32 %v47, %v158
    %v270 = vadd.f32 %v48, %v159
    %v271 = vadd.f32 %v49, %v160
    %v272 = vadd.f32 %v50, %v161
    %v273 = vadd.f32 %v51, %v162
    %v274 = vadd.f32 %v52, %v163
    %v275 = vadd.f32 %v53, %v164
    %v276 = vadd.f32 %v54, %v165
    %v277 = vadd.f32 %v55, %v166
    %v278 = vadd.f32 %v56, %v167
    %v279 = vadd.f32 %v57, %v168
    %v280 = vadd.f32 %v58, %v169
    %v281 = vadd.f32 %v59, %v170
    %v282 = vadd.f32 %v60, %v171
    %v283 = vadd.f32 %v61, %v172
    %v284 = vadd.f32 %v62, %v173
    %v285 = vadd.f32 %v63, %v174
    %v286 = vadd.f32 %v64, %v175
    %v287 = vadd.f32 %v65, %v176
    %v288 = vadd.f32 %v66, %v177
    %v289 = vadd.f32 %v67, %v178
    %v290 = vadd.f32 %v68, %v179
    %v291 = vadd.f32 %v69, %v180
    %v292 = vadd.f32 %v70, %v181
    %v293 = vadd.f32 %v71, %v182
    %v294 = vadd.f32 %v72, %v183
    %v295 = vadd.f32 %v73, %v184
    %v296 = vadd.f32 %v74, %v185
    %v297 = vadd.f32 %v75, %v186
    %v298 = vadd.f32 %v76, %v187
    %v299 = vadd.f32 %v77, %v188
    %v300 = vadd.f32 %v78, %v189
    %v301 = vadd.f32 %v79, %v190
    %v302 = vadd.f32 %v80, %v191
    %v303 = vadd.f32 %v81, %v192
    %v304 = vadd.f32 %v82, %v193
    %v305 = vadd.f32 %v83, %v194
    %v306 = vadd.f32 %v84, %v195
    %v307 = vadd.f32 %v85, %v196
    %v308 = vadd.f32 %v86, %v197
    %v309 = vadd.f32 %v87, %v198
    %v310 = vadd.f32 %v88, %v199
    %v311 = vadd.f32 %v89, %v200
    %v312 = vadd.f32 %v90, %v201
    %v313 = vadd.f32 %v91, %v202
    %v314 = vadd.f32 %v92, %v203
    %v315 = vadd.f32 %v93, %v204
    %v316 = vadd.f32 %v94, %v205
    %v317 = vadd.f32 %v95, %v206
    %v318 = vadd.f32 %v96, %v207
    %v319 = vadd.f32 %v97, %v208
    %v320 = vadd.f32 %v98, %v209
    %v321 = vadd.f32 %v99, %v210
    %v322 = vadd.f32 %v100, %v211
    %v323 = vadd.f32 %v101, %v212
    %v324 = vadd.f32 %v102, %v213
    %v325 = vadd.f32 %v103, %v214
    %v326 = vadd.f32 %v104, %v215
    %v327 = vadd.f32 %v105, %v216
    %v328 = vadd.f32 %v106, %v217
    %v329 = vadd.f32 %v107, %v218
    %v330 = vadd.f32 %v108, %v219
    %v331 = vadd.f32 %v109, %v220
    %v332 = vadd.f32 %v110, %v221
    %v333 = vadd.f32 %v111, %v222
    %v334 = vadd.f32 %v112, %v223
    %v335 = vadd.f32 %v113, %v224
    %v336 = vadd.f32 %v114, %v225
    %v337 = vadd.f32 %v115, %v226
    %v338 = vadd.f32 %v116, %v227
    %v339 = vadd.f32 %v117, %v228
    %v340 = vadd.f32 %v118, %v229
    %v341 = vadd.f32 %v119, %v230
    %v342 = vadd.f32 %v120, %v231
    %v343 = vadd.f32 %v121, %v232
    %v344 = vadd.f32 %v122, %v233
    %v345 = vadd.f32 %v123, %v234
    %v346 = vadd.f32 %v124, %v235
    %v347 = vadd.f32 %v125, %v236
    %v348 = vadd.f32 %v126, %v237
    %v349 = vadd.f32 %v127, %v238
    %v350 = vadd.f32 %v128, %v239
    %v351 = vadd.f32 %v129, %v240
    %v352 = vadd.f32 %v130, %v241
    %v353 = vadd.f32 %v131, %v242
    %v354 = vadd.f32 %v132, %v243
    %v355 = vadd.f32 %v133, %v244
    %v356 = vadd.f32 %v134, %v245
    %v357 = vadd.f32 %v135, %v246
    %v358 = vadd.f32 %v136, %v247
    %v359 = vadd.f32 %v137, %v248
    %v360 = vadd.f32 %v138, %v249
    %v361 = vadd.f32 %v139, %v250
    %v362 = vadd.f32 %v140, %v251
    %v363 = vadd.f32 %v141, %v252
    %v364 = vadd.f32 %v142, %v253
    %v365 = vadd.f32 %v143, %v254
    %v366 = vadd.f32 %v144, %v255
    %v367 = vadd.f32 %v145, %v256
    %v368 = vadd.f32 %v146, %v257
    %v369 = vadd.f32 %v147, %v258
    %v370 = vadd.f32 %v148, %v259
    %v371 = vadd.f32 %v149, %v260
    %v372 = vadd.f32 %v150, %v261
    %v373 = vmax.f32 %v262, 0.0
    %v374 = vmax.f32 %v263, 0.0
    %v375 = vmax.f32 %v264, 0.0
    %v376 = vmax.f32 %v265, 0.0
    %v377 = vmax.f32 %v266, 0.0
    %v378 = vmax.f32 %v267, 0.0
    %v379 = vmax.f32 %v268, 0.0
    %v380 = vmax.f32 %v269, 0.0
    %v381 = vmax.f32 %v270, 0.0
    %v382 = vmax.f32 %v271, 0.0
    %v383 = vmax.f32 %v272, 0.0
    %v384 = vmax.f32 %v273, 0.0
    %v385 = vmax.f32 %v274, 0.0
    %v386 = vmax.f32 %v275, 0.0
    %v387 = vmax.f32 %v276, 0.0
    %v388 = vmax.f32 %v277, 0.0
    %v389 = vmax.f32 %v278, 0.0
    %v390 = vmax.f32 %v279, 0.0
    %v391 = vmax.f32 %v280, 0.0
    %v392 = vmax.f32 %v281, 0.0
    %v393 = vmax.f32 %v282, 0.0
    %v394 = vmax.f32 %v283, 0.0
    %v395 = vmax.f32 %v284, 0.0
    %v396 = vmax.f32 %v285, 0.0
    %v397 = vmax.f32 %v286, 0.0
    %v398 = vmax.f32 %v287, 0.0
    %v399 = vmax.f32 %v288, 0.0
    %v400 = vmax.f32 %v289, 0.0
    %v401 = vmax.f32 %v290, 0.0
    %v402 = vmax.f32 %v291, 0.0
    %v403 = vmax.f32 %v292, 0.0
    %v404 = vmax.f32 %v293, 0.0
    %v405 = vmax.f32 %v294, 0.0
    %v406 = vmax.f32 %v295, 0.0
    %v407 = vmax.f32 %v296, 0.0
    %v408 = vmax.f32 %v297, 0.0
    %v409 = vmax.f32 %v298, 0.0
    %v410 = vmax.f32 %v299, 0.0
    %v411 = vmax.f32 %v300, 0.0
    %v412 = vmax.f32 %v301, 0.0
    %v413 = vmax.f32 %v302, 0.0
    %v414 = vmax.f32 %v303, 0.0
    %v415 = vmax.f32 %v304, 0.0
    %v416 = vmax.f32 %v305, 0.0
    %v417 = vmax.f32 %v306, 0.0
    %v418 = vmax.f32 %v307, 0.0
    %v419 = vmax.f32 %v308, 0.0
    %v420 = vmax.f32 %v309, 0.0
    %v421 = vmax.f32 %v310, 0.0
    %v422 = vmax.f32 %v311, 0.0
    %v423 = vmax.f32 %v312, 0.0
    %v424 = vmax.f32 %v313, 0.0
    %v425 = vmax.f32 %v314, 0.0
    %v426 = vmax.f32 %v315, 0.0
    %v427 = vmax.f32 %v316, 0.0
    %v428 = vmax.f32 %v317, 0.0
    %v429 = vmax.f32 %v318, 0.0
    %v430 = vmax.f32 %v319, 0.0
    %v431 = vmax.f32 %v320, 0.0
    %v432 = vmax.f32 %v321, 0.0
    %v433 = vmax.f32 %v322, 0.0
    %v434 = vmax.f32 %v323, 0.0
    %v435 = vmax.f32 %v324, 0.0
    %v436 = vmax.f32 %v325, 0.0
    %v437 = vmax.f32 %v326, 0.0
    %v438 = vmax.f32 %v327, 0.0
    %v439 = vmax.f32 %v328, 0.0
    %v440 = vmax.f32 %v329, 0.0
    %v441 = vmax.f32 %v330, 0.0
    %v442 = vmax.f32 %v331, 0.0
    %v443 = vmax.f32 %v332, 0.0
    %v444 = vmax.f32 %v333, 0.0
    %v445 = vmax.f32 %v334, 0.0
    %v446 = vmax.f32 %v335, 0.0
    %v447 = vmax.f32 %v336, 0.0
    %v448 = vmax.f32 %v337, 0.0
    %v449 = vmax.f32 %v338, 0.0
    %v450 = vmax.f32 %v339, 0.0
    %v451 = vmax.f32 %v340, 0.0
    %v452 = vmax.f32 %v341, 0.0
    %v453 = vmax.f32 %v342, 0.0
    %v454 = vmax.f32 %v343, 0.0
    %v455 = vmax.f32 %v344, 0.0
    %v456 = vmax.f32 %v345, 0.0
    %v457 = vmax.f32 %v346, 0.0
    %v458 = vmax.f32 %v347, 0.0
    %v459 = vmax.f32 %v348, 0.0
    %v460 = vmax.f32 %v349, 0.0
    %v461 = vmax.f32 %v350, 0.0
    %v462 = vmax.f32 %v351, 0.0
    %v463 = vmax.f32 %v352, 0.0
    %v464 = vmax.f32 %v353, 0.0
    %v465 = vmax.f32 %v354, 0.0
    %v466 = vmax.f32 %v355, 0.0
    %v467 = vmax.f32 %v356, 0.0
    %v468 = vmax.f32 %v357, 0.0
    %v469 = vmax.f32 %v358, 0.0
    %v470 = vmax.f32 %v359, 0.0
    %v471 = vmax.f32 %v360, 0.0
    %v472 = vmax.f32 %v361, 0.0
    %v473 = vmax.f32 %v362, 0.0
    %v474 = vmax.f32 %v363, 0.0
    %v475 = vmax.f32 %v364, 0.0
    %v476 = vmax.f32 %v365, 0.0
    %v477 = vmax.f32 %v366, 0.0
    %v478 = vmax.f32 %v367, 0.0
    %v479 = vmax.f32 %v368, 0.0
    %v480 = vmax.f32 %v369, 0.0
    %v481 = vmax.f32 %v370, 0.0
    %v482 = vmax.f32 %v371, 0.0
    %v483 = vmax.f32 %v372, 0.0
    %484 = vst [vmem:[#allocation7] sm:$0xff] %v373
    %485 = vst [vmem:[#allocation7 + $0x8] sm:$0xff] %v374
    %486 = vst [vmem:[#allocation7 + $0x10] sm:$0xff] %v375
    %487 = vst [vmem:[#allocation7 + $0x18] sm:$0xff] %v376
    %488 = vst [vmem:[#allocation7 + $0x20] sm:$0xff] %v377
    %489 = vst [vmem:[#allocation7 + $0x28] sm:$0xff] %v378
    %490 = vst [vmem:[#allocation7 + $0x30] sm:$0xff] %v379
    %491 = vst [vmem:[#allocation7 + $0x38] sm:$0xff] %v380
    %492 = vst [vmem:[#allocation7 + $0x40] sm:$0xff] %v381
    %493 = vst [vmem:[#allocation7 + $0x48] sm:$0xff] %v382
    %494 = vst [vmem:[#allocation7 + $0x50] sm:$0xff] %v383
    %495 = vst [vmem:[#allocation7 + $0x58] sm:$0xff] %v384
    %496 = vst [vmem:[#allocation7 + $0x60] sm:$0xff] %v385
    %497 = vst [vmem:[#allocation7 + $0x68] sm:$0xff] %v386
    %498 = vst [vmem:[#allocation7 + $0x70] sm:$0xff] %v387
    %499 = vst [vmem:[#allocation7 + $0x78] sm:$0xff] %v388
    %500 = vst [vmem:[#allocation7 + $0x80] sm:$0xff] %v389
    %501 = vst [vmem:[#allocation7 + $0x88] sm:$0xff] %v390
    %502 = vst [vmem:[#allocation7 + $0x90] sm:$0xff] %v391
    %503 = vst [vmem:[#allocation7 + $0x98] sm:$0xff] %v392
    %504 = vst [vmem:[#allocation7 + $0xa0] sm:$0xff] %v393
    %505 = vst [vmem:[#allocation7 + $0xa8] sm:$0xff] %v394
    %506 = vst [vmem:[#allocation7 + $0xb0] sm:$0xff] %v395
    %507 = vst [vmem:[#allocation7 + $0xb8] sm:$0xff] %v396
    %508 = vst [vmem:[#allocation7 + $0xc0] sm:$0xff] %v397
    %509 = vst [vmem:[#allocation7 + $0xc8] sm:$0xff] %v398
    %510 = vst [vmem:[#allocation7 + $0xd0] sm:$0xff] %v399
    %511 = vst [vmem:[#allocation7 + $0xd8] sm:$0xff] %v400
    %512 = vst [vmem:[#allocation7 + $0xe0] sm:$0xff] %v401
    %513 = vst [vmem:[#allocation7 + $0xe8] sm:$0xff] %v402
    %514 = vst [vmem:[#allocation7 + $0xf0] sm:$0xff] %v403
    %515 = vst [vmem:[#allocation7 + $0xf8] sm:$0xff] %v404
    %516 = vst [vmem:[#allocation7 + $0x100] sm:$0xff] %v405
    %517 = vst [vmem:[#allocation7 + $0x108] sm:$0xff] %v406
    %518 = vst [vmem:[#allocation7 + $0x110] sm:$0xff] %v407
    %519 = vst [vmem:[#allocation7 + $0x118] sm:$0xff] %v408
    %520 = vst [vmem:[#allocation7 + $0x120] sm:$0xff] %v409
    %521 = vst [vmem:[#allocation7 + $0x128] sm:$0xff] %v410
    %522 = vst [vmem:[#allocation7 + $0x130] sm:$0xff] %v411
    %523 = vst [vmem:[#allocation7 + $0x138] sm:$0xff] %v412
    %524 = vst [vmem:[#allocation7 + $0x140] sm:$0xff] %v413
    %525 = vst [vmem:[#allocation7 + $0x148] sm:$0xff] %v414
    %526 = vst [vmem:[#allocation7 + $0x150] sm:$0xff] %v415
    %527 = vst [vmem:[#allocation7 + $0x158] sm:$0xff] %v416
    %528 = vst [vmem:[#allocation7 + $0x160] sm:$0xff] %v417
    %529 = vst [vmem:[#allocation7 + $0x168] sm:$0xff] %v418
    %530 = vst [vmem:[#allocation7 + $0x170] sm:$0xff] %v419
    %531 = vst [vmem:[#allocation7 + $0x178] sm:$0xff] %v420
    %532 = vst [vmem:[#allocation7 + $0x180] sm:$0xff] %v421
    %533 = vst [vmem:[#allocation7 + $0x188] sm:$0xff] %v422
    %534 = vst [vmem:[#allocation7 + $0x190] sm:$0xff] %v423
    %535 = vst [vmem:[#allocation7 + $0x198] sm:$0xff] %v424
    %536 = vst [vmem:[#allocation7 + $0x1a0] sm:$0xff] %v425
    %537 = vst [vmem:[#allocation7 + $0x1a8] sm:$0xff] %v426
    %538 = vst [vmem:[#allocation7 + $0x1b0] sm:$0xff] %v427
    %539 = vst [vmem:[#allocation7 + $0x1b8] sm:$0xff] %v428
    %540 = vst [vmem:[#allocation7 + $0x1c0] sm:$0xff] %v429
    %541 = vst [vmem:[#allocation7 + $0x1c8] sm:$0xff] %v430
    %542 = vst [vmem:[#allocation7 + $0x1d0] sm:$0xff] %v431
    %543 = vst [vmem:[#allocation7 + $0x1d8] sm:$0xff] %v432
    %544 = vst [vmem:[#allocation7 + $0x1e0] sm:$0xff] %v433
    %545 = vst [vmem:[#allocation7 + $0x1e8] sm:$0xff] %v434
    %546 = vst [vmem:[#allocation7 + $0x1f0] sm:$0xff] %v435
    %547 = vst [vmem:[#allocation7 + $0x1f8] sm:$0xff] %v436
    %548 = vst [vmem:[#allocation7 + $0x200] sm:$0xff] %v437
    %549 = vst [vmem:[#allocation7 + $0x208] sm:$0xff] %v438
    %550 = vst [vmem:[#allocation7 + $0x210] sm:$0xff] %v439
    %551 = vst [vmem:[#allocation7 + $0x218] sm:$0xff] %v440
    %552 = vst [vmem:[#allocation7 + $0x220] sm:$0xff] %v441
    %553 = vst [vmem:[#allocation7 + $0x228] sm:$0xff] %v442
    %554 = vst [vmem:[#allocation7 + $0x230] sm:$0xff] %v443
    %555 = vst [vmem:[#allocation7 + $0x238] sm:$0xff] %v444
    %556 = vst [vmem:[#allocation7 + $0x240] sm:$0xff] %v445
    %557 = vst [vmem:[#allocation7 + $0x248] sm:$0xff] %v446
    %558 = vst [vmem:[#allocation7 + $0x250] sm:$0xff] %v447
    %559 = vst [vmem:[#allocation7 + $0x258] sm:$0xff] %v448
    %560 = vst [vmem:[#allocation7 + $0x260] sm:$0xff] %v449
    %561 = vst [vmem:[#allocation7 + $0x268] sm:$0xff] %v450
    %562 = vst [vmem:[#allocation7 + $0x270] sm:$0xff] %v451
    %563 = vst [vmem:[#allocation7 + $0x278] sm:$0xff] %v452
    %564 = vst [vmem:[#allocation7 + $0x280] sm:$0xff] %v453
    %565 = vst [vmem:[#allocation7 + $0x288] sm:$0xff] %v454
    %566 = vst [vmem:[#allocation7 + $0x290] sm:$0xff] %v455
    %567 = vst [vmem:[#allocation7 + $0x298] sm:$0xff] %v456
    %568 = vst [vmem:[#allocation7 + $0x2a0] sm:$0xff] %v457
    %569 = vst [vmem:[#allocation7 + $0x2a8] sm:$0xff] %v458
    %570 = vst [vmem:[#allocation7 + $0x2b0] sm:$0xff] %v459
    %571 = vst [vmem:[#allocation7 + $0x2b8] sm:$0xff] %v460
    %572 = vst [vmem:[#allocation7 + $0x2c0] sm:$0xff] %v461
    %573 = vst [vmem:[#allocation7 + $0x2c8] sm:$0xff] %v462
    %574 = vst [vmem:[#allocation7 + $0x2d0] sm:$0xff] %v463
    %575 = vst [vmem:[#allocation7 + $0x2d8] sm:$0xff] %v464
    %576 = vst [vmem:[#allocation7 + $0x2e0] sm:$0xff] %v465
    %577 = vst [vmem:[#allocation7 + $0x2e8] sm:$0xff] %v466
    %578 = vst [vmem:[#allocation7 + $0x2f0] sm:$0xff] %v467
    %579 = vst [vmem:[#allocation7 + $0x2f8] sm:$0xff] %v468
    %580 = vst [vmem:[#allocation7 + $0x300] sm:$0xff] %v469
    %581 = vst [vmem:[#allocation7 + $0x308] sm:$0xff] %v470
    %582 = vst [vmem:[#allocation7 + $0x310] sm:$0xff] %v471
    %583 = vst [vmem:[#allocation7 + $0x318] sm:$0xff] %v472
    %584 = vst [vmem:[#allocation7 + $0x320] sm:$0xff] %v473
    %585 = vst [vmem:[#allocation7 + $0x328] sm:$0xff] %v474
    %586 = vst [vmem:[#allocation7 + $0x330] sm:$0xff] %v475
    %587 = vst [vmem:[#allocation7 + $0x338] sm:$0xff] %v476
    %588 = vst [vmem:[#allocation7 + $0x340] sm:$0xff] %v477
    %589 = vst [vmem:[#allocation7 + $0x348] sm:$0xff] %v478
    %590 = vst [vmem:[#allocation7 + $0x350] sm:$0xff] %v479
    %591 = vst [vmem:[#allocation7 + $0x358] sm:$0xff] %v480
    %592 = vst [vmem:[#allocation7 + $0x360] sm:$0xff] %v481
    %593 = vst [vmem:[#allocation7 + $0x368] sm:$0xff] %v482
    %594 = vst [vmem:[#allocation7 + $0x370] sm:$0x3] %v483
    // Predicated region
    $region18: #{tpu_custom_call.1} parent=1 // pred_check
      _
    $region19: #{tpu_custom_call.1} parent=1 // pred_check_branch
      %596 = sbr.rel (0) target = $region21
    $region20: #{tpu_custom_call.1} parent=1 // pred_region
      %s598 = ssub.s32 14208, 14208
      %599 = vsyncadd [#allocation4], %s598
      %s600 = sshll.u32 [#allocation7], 4
      %s601 = int_to_ptr.vmem [resolvable:$true] %s600
      %606 = dma.vmem_to_hbm [thread:$0]  %s601, 14208, %s2, [#allocation4], 128, 128, 8
    $region21: #{tpu_custom_call.1} parent=1 // pred_fallthru
      _
    // Predicated region
    $region22: #{tpu_custom_call.1} parent=1 // pred_check
      _
    $region23: #{tpu_custom_call.1} parent=1 // pred_check_branch
      %608 = sbr.rel (0) target = $region25
    $region24: #{tpu_custom_call.1} parent=1 // pred_region
      %609 = dma.done [#allocation4], 14208
    $region25: #{tpu_custom_call.1} parent=1 // pred_fallthru
      _
    %610 = vsyncpa [#allocation3], 1
    %611 = vsyncpa [#allocation6], 1
    %612 = vsyncpa [#allocation4], 1

</llo_original>
